<compile_context>
chip_gen: v5e
topology: v5e:2x2
jax: 0.10.0
libtpu: 0.0.40
codegen_flags: <defaults>
</compile_context>

<pallas_src>
import math
from functools import partial, reduce

import numpy as np
import jax
import jax.numpy as jnp
from jax.experimental import pallas as pl
from jax.experimental.pallas import tpu as pltpu


# ----------------------------- Pallas kernel --------------------------------
def _soft_split_kernel(p_ref, w_ref, b_ref, o_ref, col_ref, *,
                       kh, kw, sh, sw, wq, rt, lt, C):
    """Fused unfold + linear embedding for one (frame, row-tile).

    p_ref   : (1, 1, n_phases*rt, C)  flattened stride-phase planes (bf16), where
              rt = (t_oh + (kh-1)//sh)*wq + (kw-1)//sw rows per phase (halo included).
    w_ref   : (kh*kw*C, hidden_pad)   embedding weight, tap-major rows (bf16).
    b_ref   : (1, hidden_pad)         bias (f32).
    o_ref   : (1, 1, lt, hidden_pad)  output tokens for this tile (lt = t_oh*wq).
    col_ref : (lt, kh*kw*C)           VMEM im2col scratch (bf16).
    """
    # Build the im2col slab: every tap is a contiguous sublane window of the phase
    # planes (no reshape, no relayout), stored once in bf16.
    for i in range(kh):
        for j in range(kw):
            phase = (i % sh) * sw + (j % sw)
            off = phase * rt + (i // sh) * wq + (j // sw)        # static offset
            t = i * kw + j
            col_ref[:, t * C:(t + 1) * C] = p_ref[0, 0, off:off + lt, :]

    # Single big-K matmul: the whole kh*kw*C reduction stays in the MXU accumulator.
    acc = jnp.dot(col_ref[...], w_ref[...], preferred_element_type=jnp.float32)
    o_ref[0, 0] = (acc + b_ref[...]).astype(o_ref.dtype)


# ------------------------- VMEM budget (generation aware) --------------------
def _vmem_budgets():
    try:
        cap = int(pltpu.get_tpu_info().vmem_capacity_bytes)
    except Exception:
        cap = 64 * 1024 * 1024          # conservative: assume v7x-sized (64 MiB) VMEM
    # (tile-selection budget, hard cap for vmem_limit_bytes) — leave headroom for
    # compiler internal scratch / spills.
    return int(cap * 0.60), int(cap * 0.72)


# ------------------------------ wrapper --------------------------------------
def soft_split_pallas(x, weight, bias, *, kernel_size, stride, padding,
                      compute_dtype=jnp.bfloat16, out_dtype=None, t_oh=None):
    """x: (N, C, H, W).  weight: (C*kh*kw, hidden) rows in nn.Unfold (channel-major)
    order.  bias: (hidden,).  Returns (N, L, hidden), L = oh*ow."""
    kh, kw = kernel_size
    sh, sw = stride
    ph, pw = padding
    N, C, H, W = x.shape
    c_in, hidden = weight.shape
    assert c_in == C * kh * kw
    out_dtype = compute_dtype if out_dtype is None else out_dtype

    oh = (H + 2 * ph - kh) // sh + 1
    ow = (W + 2 * pw - kw) // sw + 1
    assert oh >= 1 and ow >= 1
    L = oh * ow
    di_max = (kh - 1) // sh            # extra phase-plane rows needed below a tile
    dj_max = (kw - 1) // sw            # extra phase-plane cols needed to the right
    Wq = ow + dj_max                   # plane width == per-output-row token count
    n_phases = sh * sw
    K = kh * kw * C
    hidden_pad = pl.cdiv(hidden, 128) * 128

    in_b = np.dtype(compute_dtype).itemsize
    out_b = np.dtype(out_dtype).itemsize

    def vmem_need(t):
        rt = (t + di_max) * Wq + dj_max
        lt = t * Wq
        return (2 * n_phases * rt * C * in_b       # input block (double-buffered)
                + 2 * K * hidden_pad * in_b        # weight (grid-invariant, resident)
                + 2 * 8 * hidden_pad * 4           # bias
                + 2 * lt * hidden_pad * out_b      # output block (double-buffered)
                + lt * K * in_b)                   # im2col VMEM scratch

    budget_sel, budget_hard = _vmem_budgets()
    if t_oh is None:
        # Largest row-tile that fits the VMEM budget with <=12.5% padded-row waste.
        t_oh = 1
        for t in range(1, oh + 1):
            n_t = -(-oh // t)
            waste = n_t * t - oh
            if vmem_need(t) <= budget_sel and waste * 8 <= oh:
                t_oh = t
    t_oh = max(1, min(int(t_oh), oh))

    n_tiles = -(-oh // t_oh)
    oh_pad = n_tiles * t_oh
    RT = (t_oh + di_max) * Wq + dj_max             # flat phase-plane rows per tile
    Lt = t_oh * Wq                                 # tokens produced per tile
    Hq = oh_pad + di_max                           # phase-plane height needed
    tH, tW = Hq * sh, Wq * sw                      # padded input extent actually read

    # ---- pad + ONE 6-D transpose: NCHW -> stride-phase planes (single pass) ----
    # TODO(synk): accept NHWC / pre-split input to drop this input-sized pre-pass.
    xb = x.astype(compute_dtype)
    xp = jnp.pad(xb, ((0, 0), (0, 0),
                      (ph, max(0, tH - ph - H)),
                      (pw, max(0, tW - pw - W))))[:, :, :tH, :tW]
    # phases[n, r, s, a, b, c] = x_pad[n, c, a*sh + r, b*sw + s]
    phases = xp.reshape(N, C, Hq, sh, Wq, sw).transpose(0, 3, 5, 2, 4, 1)
    flat = phases.reshape(N, n_phases, Hq * Wq, C)
    if dj_max > 0:                                  # tail rows read only by discarded tokens
        flat = jnp.pad(flat, ((0, 0), (0, 0), (0, dj_max), (0, 0)))

    # ---- row tiles with the (kh-1)//sh-row halo duplicated (standard BlockSpecs,
    #      no overlapping windows needed inside the pallas_call) ----
    tiled = jnp.stack([flat[:, :, tau * t_oh * Wq: tau * t_oh * Wq + RT, :]
                       for tau in range(n_tiles)], axis=1)      # (N, n_tiles, n_ph, RT, C)
    tiled = tiled.reshape(N, n_tiles, n_phases * RT, C)

    # ---- weight: channel-major unfold rows -> tap-major; lane-pad hidden to 128 ----
    w_r = weight.reshape(C, kh * kw, hidden).transpose(1, 0, 2).reshape(K, hidden)
    b_r = bias
    if hidden_pad != hidden:
        w_r = jnp.pad(w_r, ((0, 0), (0, hidden_pad - hidden)))
        b_r = jnp.pad(b_r, (0, hidden_pad - hidden))
    w_r = w_r.astype(compute_dtype)
    b_r = b_r.reshape(1, hidden_pad).astype(jnp.float32)

    kernel = partial(_soft_split_kernel, kh=kh, kw=kw, sh=sh, sw=sw,
                     wq=Wq, rt=RT, lt=Lt, C=C)

    need = vmem_need(t_oh)
    vmem_limit = int(min(budget_hard, max(need + (8 << 20), 32 << 20)))
    vmem_limit = max(vmem_limit, need + (4 << 20))   # never set the limit below usage

    out = pl.pallas_call(
        kernel,
        out_shape=jax.ShapeDtypeStruct((N, n_tiles, Lt, hidden_pad), out_dtype),
        grid_spec=pltpu.PrefetchScalarGridSpec(
            num_scalar_prefetch=0,
            grid=(N, n_tiles),                       # frame x row-tile, both independent
            in_specs=[
                pl.BlockSpec((1, 1, n_phases * RT, C), lambda n, t: (n, t, 0, 0)),
                # Weight / bias block indices are grid-invariant -> DMA'd into VMEM once
                # and kept resident across the whole grid.
                pl.BlockSpec((K, hidden_pad), lambda n, t: (0, 0)),
                pl.BlockSpec((1, hidden_pad), lambda n, t: (0, 0)),
            ],
            out_specs=pl.BlockSpec((1, 1, Lt, hidden_pad), lambda n, t: (n, t, 0, 0)),
            scratch_shapes=[pltpu.VMEM((Lt, K), compute_dtype)],   # bf16 im2col slab
        ),
        compiler_params=pltpu.CompilerParams(
            dimension_semantics=("parallel", "parallel"),
            vmem_limit_bytes=vmem_limit,
        ),
    )(tiled, w_r, b_r)

    # (N, n_tiles, t_oh*Wq, hidden_pad) -> (N, oh_pad, Wq, hidden_pad) -> valid tokens.
    out = out.reshape(N, oh_pad, Wq, hidden_pad)[:, :oh, :ow, :hidden]
    return out.reshape(N, L, hidden)


# ------------------------------- module --------------------------------------
class SoftSplitPallas:
    """JAX/Pallas equivalent of SoftSplit (eval / inference mode).

    Note: math is bf16-input / f32-accumulate and the default output dtype is bf16,
    so callers expecting full-f32 nn.Linear precision see bf16-level error (~1e-2 rel).
    """

    def __init__(self, channel, hidden, kernel_size, stride, padding, key,
                 dropout=0.1, compute_dtype=jnp.bfloat16, out_dtype=None):
        self.kernel_size = kernel_size
        self.stride = stride
        self.padding = padding
        self.hidden = hidden
        self.compute_dtype = compute_dtype
        self.out_dtype = out_dtype
        self.c_in = reduce(lambda a, b: a * b, kernel_size) * channel

        # nn.Linear default init: U(-1/sqrt(c_in), 1/sqrt(c_in)); rows kept in nn.Unfold
        # (channel-major over (c, kh, kw)) order.
        kw_, kb_ = jax.random.split(key)
        bound = 1.0 / math.sqrt(self.c_in)
        self.weight = jax.random.uniform(kw_, (self.c_in, hidden), jnp.float32,
                                         minval=-bound, maxval=bound)
        self.bias = jax.random.uniform(kb_, (hidden,), jnp.float32,
                                       minval=-bound, maxval=bound)

    def __call__(self, x, b):
        # x: (b*t, C, H, W)
        emb = soft_split_pallas(x, self.weight, self.bias,
                                kernel_size=self.kernel_size,
                                stride=self.stride,
                                padding=self.padding,
                                compute_dtype=self.compute_dtype,
                                out_dtype=self.out_dtype)        # (N, L, hidden)
        emb = emb.reshape(b, -1, self.hidden)
        # TODO(synk): nn.Dropout(p=0.1) is identity in eval mode; training-mode dropout
        # would need pltpu.prng_seed + pltpu.stateful_bernoulli inside the kernel.
        return emb


# --------------------------- reference (check only) ---------------------------
def unfold_nchw_reference(x, kernel_size, stride, padding):
    """Pure-JAX torch.nn.Unfold: (N,C,H,W) -> (N, C*kh*kw, L), channel-major order."""
    kh, kw = kernel_size
    sh, sw = stride
    ph, pw = padding
    xp = jnp.pad(x, ((0, 0), (0, 0), (ph, ph), (pw, pw)))
    N, C, Hp, Wp = xp.shape
    oh = (Hp - kh) // sh + 1
    ow = (Wp - kw) // sw + 1
    cols = []
    for i in range(kh):
        for j in range(kw):
            cols.append(xp[:, :, i:i + sh * oh:sh, j:j + sw * ow:sw])
    cols = jnp.stack(cols, axis=0).reshape(kh, kw, N, C, oh, ow)
    cols = cols.transpose(2, 3, 0, 1, 4, 5).reshape(N, C * kh * kw, oh * ow)
    return cols


# ------------------------------- demo ----------------------------------------
if __name__ == "__main__":
    key = jax.random.PRNGKey(0)
    k_x, k_params, k_x2, k_w2, k_b2 = jax.random.split(key, 5)

    # ---- primary small demo: b=2 videos x t=2 frames, C=4 channels, 16x16 ----
    b, t, C, H, W = 2, 2, 4, 16, 16
    hidden = 32
    kernel_size, stride, padding = (3, 3), (2, 2), (1, 1)

    x = jax.random.normal(k_x, (b * t, C, H, W), jnp.float32)
    module = SoftSplitPallas(C, hidden, kernel_size, stride, padding, k_params)
    out = jax.block_until_ready(module(x, b))

    feat = unfold_nchw_reference(x, kernel_size, stride, padding)     # (N, c_in, L)
    feat = jnp.transpose(feat, (0, 2, 1))                             # (N, L, c_in)
    ref_f32 = (feat @ module.weight + module.bias).reshape(b, -1, hidden)
    # Apples-to-apples reference: same bf16-rounded inputs, f32 accumulate.
    tok_bf = feat.astype(jnp.bfloat16).astype(jnp.float32)
    w_bf = module.weight.astype(jnp.bfloat16).astype(jnp.float32)
    ref_bf = (tok_bf @ w_bf + module.bias).reshape(b, -1, hidden)

    out32 = out.astype(jnp.float32)
    assert out.shape == ref_f32.shape, (out.shape, ref_f32.shape)
    assert jnp.allclose(out32, ref_bf, atol=3e-2, rtol=3e-2), \
        float(jnp.max(jnp.abs(out32 - ref_bf)))
    assert jnp.allclose(out32, ref_f32, atol=1e-1, rtol=1e-1), \
        float(jnp.max(jnp.abs(out32 - ref_f32)))

    # ---- secondary check: FuseFormer-like geometry at toy size (7x7 kernel,
    #      stride 3, non-square frame, forced multi-row-tile with halo path) ----
    C2, H2, W2, hidden2 = 8, 20, 26, 48
    ks2, st2, pd2 = (7, 7), (3, 3), (3, 3)
    x2 = jax.random.normal(k_x2, (2, C2, H2, W2), jnp.float32)
    c_in2 = C2 * ks2[0] * ks2[1]
    w2 = jax.random.uniform(k_w2, (c_in2, hidden2), jnp.float32, minval=-0.05, maxval=0.05)
    b2 = jax.random.uniform(k_b2, (hidden2,), jnp.float32, minval=-0.05, maxval=0.05)

    out2 = jax.block_until_ready(
        soft_split_pallas(x2, w2, b2, kernel_size=ks2, stride=st2, padding=pd2, t_oh=3))
    feat2 = jnp.transpose(unfold_nchw_reference(x2, ks2, st2, pd2), (0, 2, 1))
    ref2 = (feat2.astype(jnp.bfloat16).astype(jnp.float32)
            @ w2.astype(jnp.bfloat16).astype(jnp.float32) + b2)
    assert out2.shape == ref2.shape, (out2.shape, ref2.shape)
    assert jnp.allclose(out2.astype(jnp.float32), ref2, atol=3e-2, rtol=3e-2), \
        float(jnp.max(jnp.abs(out2.astype(jnp.float32) - ref2)))

    print("KERNEL_OK")
</pallas_src>

<mosaic_0001>
module attributes {stable_mosaic.version = 11 : i64} {
  func.func @_soft_split_kernel(%arg0: i32, %arg1: i32, %arg2: memref<1x1x328x4xbf16, #tpu.memory_space<vmem>>, %arg3: memref<36x128xbf16, #tpu.memory_space<vmem>>, %arg4: memref<1x128xf32, #tpu.memory_space<vmem>>, %arg5: memref<1x1x72x128xbf16, #tpu.memory_space<vmem>>, %arg6: memref<72x36xbf16, #tpu.memory_space<vmem>>) attributes {dimension_semantics = [#tpu.dimension_semantics<parallel>, #tpu.dimension_semantics<parallel>], iteration_bounds = array<i64: 4, 1>, scalar_prefetch = 0 : i64, scratch_operands = 1 : i64, tpu.core_type = #tpu.core_type<tc>, window_params = [{transform_indices = @transform_0, window_bounds = array<i64: 1, 1, 328, 4>}, {pipeline_mode = #tpu.pipeline_mode<synchronous>, transform_indices = @transform_1, window_bounds = array<i64: 36, 128>}, {pipeline_mode = #tpu.pipeline_mode<synchronous>, transform_indices = @transform_2, window_bounds = array<i64: 1, 128>}, {transform_indices = @transform_3, window_bounds = array<i64: 1, 1, 72, 128>}]} {
    %c0 = arith.constant 0 : index
    %c0_0 = arith.constant 0 : index
    %c0_1 = arith.constant 0 : index
    %c0_2 = arith.constant 0 : index
    %0 = vector.load %arg2[%c0, %c0_0, %c0_1, %c0_2] : memref<1x1x328x4xbf16, #tpu.memory_space<vmem>>, vector<1x1x72x4xbf16>
    %1 = vector.shape_cast %0 : vector<1x1x72x4xbf16> to vector<72x4xbf16>
    %c0_3 = arith.constant 0 : index
    %c0_4 = arith.constant 0 : index
    %2 = vector.load %arg6[%c0_3, %c0_4] : memref<72x36xbf16, #tpu.memory_space<vmem>>, vector<72x4xbf16>
    tpu.vector_store %arg6[%c0_3, %c0_4], %1 {strides = array<i32>} : memref<72x36xbf16, #tpu.memory_space<vmem>>, vector<72x4xbf16>,
    %c0_5 = arith.constant 0 : index
    %c0_6 = arith.constant 0 : index
    %c82 = arith.constant 82 : index
    %c0_7 = arith.constant 0 : index
    %3 = vector.load %arg2[%c0_5, %c0_6, %c82, %c0_7] : memref<1x1x328x4xbf16, #tpu.memory_space<vmem>>, vector<1x1x72x4xbf16>
    %4 = vector.shape_cast %3 : vector<1x1x72x4xbf16> to vector<72x4xbf16>
    %c0_8 = arith.constant 0 : index
    %c4 = arith.constant 4 : index
    %5 = vector.load %arg6[%c0_8, %c4] : memref<72x36xbf16, #tpu.memory_space<vmem>>, vector<72x4xbf16>
    tpu.vector_store %arg6[%c0_8, %c4], %4 {strides = array<i32>} : memref<72x36xbf16, #tpu.memory_space<vmem>>, vector<72x4xbf16>,
    %c0_9 = arith.constant 0 : index
    %c0_10 = arith.constant 0 : index
    %c1 = arith.constant 1 : index
    %c0_11 = arith.constant 0 : index
    %6 = vector.load %arg2[%c0_9, %c0_10, %c1, %c0_11] : memref<1x1x328x4xbf16, #tpu.memory_space<vmem>>, vector<1x1x72x4xbf16>
    %7 = vector.shape_cast %6 : vector<1x1x72x4xbf16> to vector<72x4xbf16>
    %c0_12 = arith.constant 0 : index
    %c8 = arith.constant 8 : index
    %8 = vector.load %arg6[%c0_12, %c8] : memref<72x36xbf16, #tpu.memory_space<vmem>>, vector<72x4xbf16>
    tpu.vector_store %arg6[%c0_12, %c8], %7 {strides = array<i32>} : memref<72x36xbf16, #tpu.memory_space<vmem>>, vector<72x4xbf16>,
    %c0_13 = arith.constant 0 : index
    %c0_14 = arith.constant 0 : index
    %c164 = arith.constant 164 : index
    %c0_15 = arith.constant 0 : index
    %9 = vector.load %arg2[%c0_13, %c0_14, %c164, %c0_15] : memref<1x1x328x4xbf16, #tpu.memory_space<vmem>>, vector<1x1x72x4xbf16>
    %10 = vector.shape_cast %9 : vector<1x1x72x4xbf16> to vector<72x4xbf16>
    %c0_16 = arith.constant 0 : index
    %c12 = arith.constant 12 : index
    %11 = vector.load %arg6[%c0_16, %c12] : memref<72x36xbf16, #tpu.memory_space<vmem>>, vector<72x4xbf16>
    tpu.vector_store %arg6[%c0_16, %c12], %10 {strides = array<i32>} : memref<72x36xbf16, #tpu.memory_space<vmem>>, vector<72x4xbf16>,
    %c0_17 = arith.constant 0 : index
    %c0_18 = arith.constant 0 : index
    %c246 = arith.constant 246 : index
    %c0_19 = arith.constant 0 : index
    %12 = vector.load %arg2[%c0_17, %c0_18, %c246, %c0_19] : memref<1x1x328x4xbf16, #tpu.memory_space<vmem>>, vector<1x1x72x4xbf16>
    %13 = vector.shape_cast %12 : vector<1x1x72x4xbf16> to vector<72x4xbf16>
    %c0_20 = arith.constant 0 : index
    %c16 = arith.constant 16 : index
    %14 = vector.load %arg6[%c0_20, %c16] : memref<72x36xbf16, #tpu.memory_space<vmem>>, vector<72x4xbf16>
    tpu.vector_store %arg6[%c0_20, %c16], %13 {strides = array<i32>} : memref<72x36xbf16, #tpu.memory_space<vmem>>, vector<72x4xbf16>,
    %c0_21 = arith.constant 0 : index
    %c0_22 = arith.constant 0 : index
    %c165 = arith.constant 165 : index
    %c0_23 = arith.constant 0 : index
    %15 = vector.load %arg2[%c0_21, %c0_22, %c165, %c0_23] : memref<1x1x328x4xbf16, #tpu.memory_space<vmem>>, vector<1x1x72x4xbf16>
    %16 = vector.shape_cast %15 : vector<1x1x72x4xbf16> to vector<72x4xbf16>
    %c0_24 = arith.constant 0 : index
    %c20 = arith.constant 20 : index
    %17 = vector.load %arg6[%c0_24, %c20] : memref<72x36xbf16, #tpu.memory_space<vmem>>, vector<72x4xbf16>
    tpu.vector_store %arg6[%c0_24, %c20], %16 {strides = array<i32>} : memref<72x36xbf16, #tpu.memory_space<vmem>>, vector<72x4xbf16>,
    %c0_25 = arith.constant 0 : index
    %c0_26 = arith.constant 0 : index
    %c9 = arith.constant 9 : index
    %c0_27 = arith.constant 0 : index
    %18 = vector.load %arg2[%c0_25, %c0_26, %c9, %c0_27] : memref<1x1x328x4xbf16, #tpu.memory_space<vmem>>, vector<1x1x72x4xbf16>
    %19 = vector.shape_cast %18 : vector<1x1x72x4xbf16> to vector<72x4xbf16>
    %c0_28 = arith.constant 0 : index
    %c24 = arith.constant 24 : index
    %20 = vector.load %arg6[%c0_28, %c24] : memref<72x36xbf16, #tpu.memory_space<vmem>>, vector<72x4xbf16>
    tpu.vector_store %arg6[%c0_28, %c24], %19 {strides = array<i32>} : memref<72x36xbf16, #tpu.memory_space<vmem>>, vector<72x4xbf16>,
    %c0_29 = arith.constant 0 : index
    %c0_30 = arith.constant 0 : index
    %c91 = arith.constant 91 : index
    %c0_31 = arith.constant 0 : index
    %21 = vector.load %arg2[%c0_29, %c0_30, %c91, %c0_31] : memref<1x1x328x4xbf16, #tpu.memory_space<vmem>>, vector<1x1x72x4xbf16>
    %22 = vector.shape_cast %21 : vector<1x1x72x4xbf16> to vector<72x4xbf16>
    %c0_32 = arith.constant 0 : index
    %c28 = arith.constant 28 : index
    %23 = vector.load %arg6[%c0_32, %c28] : memref<72x36xbf16, #tpu.memory_space<vmem>>, vector<72x4xbf16>
    tpu.vector_store %arg6[%c0_32, %c28], %22 {strides = array<i32>} : memref<72x36xbf16, #tpu.memory_space<vmem>>, vector<72x4xbf16>,
    %c0_33 = arith.constant 0 : index
    %c0_34 = arith.constant 0 : index
    %c10 = arith.constant 10 : index
    %c0_35 = arith.constant 0 : index
    %24 = vector.load %arg2[%c0_33, %c0_34, %c10, %c0_35] : memref<1x1x328x4xbf16, #tpu.memory_space<vmem>>, vector<1x1x72x4xbf16>
    %25 = vector.shape_cast %24 : vector<1x1x72x4xbf16> to vector<72x4xbf16>
    %c0_36 = arith.constant 0 : index
    %c32 = arith.constant 32 : index
    %26 = vector.load %arg6[%c0_36, %c32] : memref<72x36xbf16, #tpu.memory_space<vmem>>, vector<72x4xbf16>
    tpu.vector_store %arg6[%c0_36, %c32], %25 {strides = array<i32>} : memref<72x36xbf16, #tpu.memory_space<vmem>>, vector<72x4xbf16>,
    %c0_37 = arith.constant 0 : index
    %c0_38 = arith.constant 0 : index
    %27 = vector.load %arg6[%c0_37, %c0_38] : memref<72x36xbf16, #tpu.memory_space<vmem>>, vector<72x36xbf16>
    %c0_39 = arith.constant 0 : index
    %c0_40 = arith.constant 0 : index
    %28 = vector.load %arg3[%c0_39, %c0_40] : memref<36x128xbf16, #tpu.memory_space<vmem>>, vector<36x128xbf16>
    %cst = arith.constant dense<0.000000e+00> : vector<72x128xf32>
    %29 = tpu.matmul %27, %28, %cst {dimension_numbers = #tpu.dot_dimension_numbers<[1], [0], [0], [1], [0, 0, 1, 1], [], []>} : vector<72x36xbf16>, vector<36x128xbf16>, vector<72x128xf32> -> vector<72x128xf32>
    %c0_41 = arith.constant 0 : index
    %c0_42 = arith.constant 0 : index
    %30 = vector.load %arg4[%c0_41, %c0_42] : memref<1x128xf32, #tpu.memory_space<vmem>>, vector<1x128xf32>
    %31 = vector.broadcast %30 : vector<1x128xf32> to vector<72x128xf32>
    %32 = arith.addf %29, %31 : vector<72x128xf32>
    %33 = arith.truncf %32 : vector<72x128xf32> to vector<72x128xbf16>
    %c0_43 = arith.constant 0 : index
    %c0_44 = arith.constant 0 : index
    %c0_45 = arith.constant 0 : index
    %c0_46 = arith.constant 0 : index
    %34 = vector.load %arg5[%c0_43, %c0_44, %c0_45, %c0_46] : memref<1x1x72x128xbf16, #tpu.memory_space<vmem>>, vector<1x1x72x128xbf16>
    %35 = vector.shape_cast %34 : vector<1x1x72x128xbf16> to vector<72x128xbf16>
    %36 = vector.shape_cast %33 : vector<72x128xbf16> to vector<1x1x72x128xbf16>
    tpu.vector_store %arg5[%c0_43, %c0_44, %c0_45, %c0_46], %36 {strides = array<i32>} : memref<1x1x72x128xbf16, #tpu.memory_space<vmem>>, vector<1x1x72x128xbf16>,
    return
  }
  func.func @transform_0(%arg0: i32, %arg1: i32) -> (i32, i32, i32, i32) {
    %c0_i32 = arith.constant 0 : i32
    %c0_i32_0 = arith.constant 0 : i32
    %c0_i32_1 = arith.constant 0 : i32
    return %arg0, %arg1, %c0_i32, %c0_i32_0 : i32, i32, i32, i32
  }
  func.func @transform_1(%arg0: i32, %arg1: i32) -> (i32, i32) {
    %c0_i32 = arith.constant 0 : i32
    %c0_i32_0 = arith.constant 0 : i32
    %c0_i32_1 = arith.constant 0 : i32
    return %c0_i32, %c0_i32_0 : i32, i32
  }
  func.func @transform_2(%arg0: i32, %arg1: i32) -> (i32, i32) {
    %c0_i32 = arith.constant 0 : i32
    %c0_i32_0 = arith.constant 0 : i32
    %c0_i32_1 = arith.constant 0 : i32
    return %c0_i32, %c0_i32_0 : i32, i32
  }
  func.func @transform_3(%arg0: i32, %arg1: i32) -> (i32, i32, i32, i32) {
    %c0_i32 = arith.constant 0 : i32
    %c0_i32_0 = arith.constant 0 : i32
    %c0_i32_1 = arith.constant 0 : i32
    return %arg0, %arg1, %c0_i32, %c0_i32_0 : i32, i32, i32, i32
  }
}

</mosaic_0001>

<llo_original>
// kernel: tpu_custom_call.1
$region0: #{tpu_custom_call.1}
  #allocation0 [shape = 'u32[]', space=smem, size = 0x4, offset = 0x4, fixed_abs, tag = 'smem constant byte address 0x4 - core index']
  #allocation1 [shape = 'u32[72,128]{1,0:T(1,128)}', space=vmem, size = 0x9000, scoped, tag = 'internal scratch']
  #allocation2 [shape = 'bf16[72,36]{1,0:T(8,128)(2,1)}', space=vmem, size = 0x4800, scoped, tag = 'scratch operand']
  %s0 = inlined_call_operand.vmem [shape: bf16[4,1,328,4], index: 0, kind: input, shape index: {}]
  %s1 = inlined_call_operand.vmem [shape: bf16[36,128], index: 1, kind: input, shape index: {}]
  %s2 = inlined_call_operand.vmem [shape: f32[1,128], index: 2, kind: input, shape index: {}]
  %s3 = inlined_call_operand.hbm [shape: bf16[4,1,72,128], index: 3, kind: output, shape index: {}]
  %s4 = sld [smem:[#allocation0]]
  $region45: #{tpu_custom_call.1} parent=0
    _
  %s6 = ssub.s32 1, %s4
  %s7 = scalar_select 0, %s6, %s4
  $region1: #{tpu_custom_call.1} parent=0
    #allocation3 [shape = 'u8[36864]{0}', space=vmem, size = 0x9000, scoped, tag = 'output window, operand 0']
    #allocation4 [shape = 's32[2]{0}', space=sflag, size = 0x8, scoped, tag = 'scoped memory for tpu_custom_call.1']
    %8 = vsyncpa [#allocation4], 0
    %s9 = scalar_lea.sflag [#allocation4], 1
    %10 = vsyncpa %s9, 0
    loop: start=0, step=1, limit=6
    $region2: #{tpu_custom_call.1} parent=1 // loop_pre_header
      _
    $region3: #{tpu_custom_call.1} parent=1 // loop_header
      %s12 = sphi 0, %s16
      %p13 = scmp.ge.s32.totalorder %s12, 6
      %s19 = sphi 0, %s31
      %s20 = sphi 0, %s27
      %s21 = sphi 0, %s19
      %s22 = sphi 0, %s20
      %s23 = sphi 0, %s21
      %s24 = sphi 0, %s22
      %s36 = sphi 0, %s38
      %s39 = sphi 0, %s36
      %s40 = sphi 0, %s39
      %s56 = sphi 0, %s40
      %s60 = sphi 0, %s60
      %s62 = sphi 0, %s60
      %s63 = sphi 0, %s62
      %s77 = sphi 0, %s63
      %s81 = sphi 0, %s81
      %s83 = sphi 0, %s81
      %s84 = sphi 0, %s83
      %s98 = sphi 0, %s84
      %s106 = sphi 0, %s108
      %s109 = sphi 0, %s106
      %s110 = sphi 0, %s109
      %s126 = sphi 0, %s110
    $region4: #{tpu_custom_call.1} parent=1 // loop_header_branch
      %15 = sbr.rel (%p13) target = $region8
    $region5: #{tpu_custom_call.1} parent=1 // loop_body
      %s17 = ssub.s32 %s12, 1
      %s18 = ssub.s32 %s12, 2
      %s25 = sadd.s32 1, %s20
      %p26 = scmp.ge.s32.totalorder %s25, 1
      %s27 = scalar_select %p26, 0, %s25
      %s28 = sadd.s32 1, %s19
      %s29 = scalar_select %p26, %s28, %s19
      %p30 = scmp.ge.s32.totalorder %s29, 4
      %s31 = scalar_select %p30, 0, %s29
      %s32 = ssub.s32 %s19, %s31
      %s33 = ssub.s32 %s20, %s27
      %s34 = sor.u32 %s32, %s33
      %p35 = scmp.eq.s32.totalorder %s34, 0
      %s37 = sadd.s32 %s36, 1
      %s38 = scalar_select %p35, %s36, %s37
      %p41 = pneg %p35
      %p42 = scmp.eq.s32.totalorder %s12, 3
      %p43 = por %p41, %p42
      %p44 = scmp.ne.s32.totalorder %s36, %s39
      %p45 = scmp.eq.s32.totalorder %s12, 0
      %p46 = por %p44, %p45
      %p47 = scmp.ne.s32.totalorder %s36, %s39
      %p48 = scmp.eq.s32.totalorder %s17, 3
      %p49 = por %p47, %p48
      %p50 = scmp.ne.s32.totalorder %s39, %s40
      %p51 = scmp.eq.s32.totalorder %s17, 0
      %p52 = por %p50, %p51
      %p53 = scmp.ne.s32.totalorder %s39, %s40
      %p54 = scmp.eq.s32.totalorder %s18, 3
      %p55 = por %p53, %p54
      %p57 = scmp.ne.s32.totalorder %s40, %s56
      %p58 = scmp.eq.s32.totalorder %s18, 0
      %p59 = por %p57, %p58
      %s61 = sadd.s32 %s60, 1
      %p64 = scmp.eq.s32.totalorder %s12, 3
      %p65 = scmp.ne.s32.totalorder %s60, %s62
      %p66 = scmp.eq.s32.totalorder %s12, 0
      %p67 = por %p65, %p66
      %p68 = scmp.ne.s32.totalorder %s60, %s62
      %p69 = scmp.eq.s32.totalorder %s17, 3
      %p70 = por %p68, %p69
      %p71 = scmp.ne.s32.totalorder %s62, %s63
      %p72 = scmp.eq.s32.totalorder %s17, 0
      %p73 = por %p71, %p72
      %p74 = scmp.ne.s32.totalorder %s62, %s63
      %p75 = scmp.eq.s32.totalorder %s18, 3
      %p76 = por %p74, %p75
      %p78 = scmp.ne.s32.totalorder %s63, %s77
      %p79 = scmp.eq.s32.totalorder %s18, 0
      %p80 = por %p78, %p79
      %s82 = sadd.s32 %s81, 1
      %p85 = scmp.eq.s32.totalorder %s12, 3
      %p86 = scmp.ne.s32.totalorder %s81, %s83
      %p87 = scmp.eq.s32.totalorder %s12, 0
      %p88 = por %p86, %p87
      %p89 = scmp.ne.s32.totalorder %s81, %s83
      %p90 = scmp.eq.s32.totalorder %s17, 3
      %p91 = por %p89, %p90
      %p92 = scmp.ne.s32.totalorder %s83, %s84
      %p93 = scmp.eq.s32.totalorder %s17, 0
      %p94 = por %p92, %p93
      %p95 = scmp.ne.s32.totalorder %s83, %s84
      %p96 = scmp.eq.s32.totalorder %s18, 3
      %p97 = por %p95, %p96
      %p99 = scmp.ne.s32.totalorder %s84, %s98
      %p100 = scmp.eq.s32.totalorder %s18, 0
      %p101 = por %p99, %p100
      %s102 = ssub.s32 %s19, %s31
      %s103 = ssub.s32 %s20, %s27
      %s104 = sor.u32 %s102, %s103
      %p105 = scmp.eq.s32.totalorder %s104, 0
      %s107 = sadd.s32 %s106, 1
      %s108 = scalar_select %p105, %s106, %s107
      %p111 = pneg %p105
      %p112 = scmp.eq.s32.totalorder %s12, 3
      %p113 = por %p111, %p112
      %p114 = scmp.ne.s32.totalorder %s106, %s109
      %p115 = scmp.eq.s32.totalorder %s12, 0
      %p116 = por %p114, %p115
      %p117 = scmp.ne.s32.totalorder %s106, %s109
      %p118 = scmp.eq.s32.totalorder %s17, 3
      %p119 = por %p117, %p118
      %p120 = scmp.ne.s32.totalorder %s109, %s110
      %p121 = scmp.eq.s32.totalorder %s17, 0
      %p122 = por %p120, %p121
      %p123 = scmp.ne.s32.totalorder %s109, %s110
      %p124 = scmp.eq.s32.totalorder %s18, 3
      %p125 = por %p123, %p124
      %p127 = scmp.ne.s32.totalorder %s110, %s126
      %p128 = scmp.eq.s32.totalorder %s18, 0
      %p129 = por %p127, %p128
      %p130 = scmp.le.s32.totalorder 1, %s12
      %p131 = scmp.lt.s32.totalorder %s12, 5
      %p132 = pnand %p130, %p131
      %p133 = pneg %p132
      // Predicated region
      $region9: #{tpu_custom_call.1} parent=5 // pred_check
        _
      $region10: #{tpu_custom_call.1} parent=5 // pred_check_branch
        %135 = sbr.rel (%p132) target = $region12
      $region11: #{tpu_custom_call.1} parent=5 // pred_region
        %s136 = ssub.s32 %s12, 1
        // Predicated region
        $region13: #{tpu_custom_call.1} parent=11 // pred_check
          %p137 = pneg %p73
        $region14: #{tpu_custom_call.1} parent=11 // pred_check_branch
          %139 = sbr.rel (%p137) target = $region16
        $region15: #{tpu_custom_call.1} parent=11 // pred_region
          _
        $region16: #{tpu_custom_call.1} parent=11 // pred_fallthru
          _
        // Predicated region
        $region17: #{tpu_custom_call.1} parent=11 // pred_check
          %p140 = pneg %p94
        $region18: #{tpu_custom_call.1} parent=11 // pred_check_branch
          %142 = sbr.rel (%p140) target = $region20
        $region19: #{tpu_custom_call.1} parent=11 // pred_region
          _
        $region20: #{tpu_custom_call.1} parent=11 // pred_fallthru
          _
      $region12: #{tpu_custom_call.1} parent=5 // pred_fallthru
        _
      %p143 = scmp.lt.s32.totalorder %s12, 4
      // Predicated region
      $region21: #{tpu_custom_call.1} parent=5 // pred_check
        %p144 = pneg %p143
      $region22: #{tpu_custom_call.1} parent=5 // pred_check_branch
        %146 = sbr.rel (%p144) target = $region24
      $region23: #{tpu_custom_call.1} parent=5 // pred_region
        // Predicated region
        $region25: #{tpu_custom_call.1} parent=23 // pred_check
          %p147 = pneg %p46
        $region26: #{tpu_custom_call.1} parent=23 // pred_check_branch
          %149 = sbr.rel (%p147) target = $region28
        $region27: #{tpu_custom_call.1} parent=23 // pred_region
          %p150 = scmp.lt.s32.totalorder %s19, 3
          %s151 = scalar_select %p150, %s19, 3
          %p152 = scmp.lt.s32.totalorder %s20, 0
          %s153 = scalar_select %p152, %s20, 0
          %s154 = smul.addr %s153, 41
          %s155 = smul.addr %s151, 41
          %s156 = sadd.s32 %s154, %s155
          %s157 = smul.addr %s156, 4
          %s158 = scalar_lea.vmem %s0, %s157
        $region28: #{tpu_custom_call.1} parent=23 // pred_fallthru
          _
      $region24: #{tpu_custom_call.1} parent=5 // pred_fallthru
        _
      %p159 = scmp.le.s32.totalorder 1, %s12
      %p160 = scmp.lt.s32.totalorder %s12, 5
      %p161 = pnand %p159, %p160
      %p162 = pneg %p161
      // Predicated region
      $region29: #{tpu_custom_call.1} parent=5 // pred_check
        _
      $region30: #{tpu_custom_call.1} parent=5 // pred_check_branch
        %164 = sbr.rel (%p161) target = $region32
      $region31: #{tpu_custom_call.1} parent=5 // pred_region
        %s165 = ssub.s32 %s12, 1
        %p166 = scmp.lt.s32.totalorder %s21, 3
        %s167 = scalar_select %p166, %s21, 3
        %p168 = scmp.lt.s32.totalorder %s22, 0
        %s169 = scalar_select %p168, %s22, 0
        %s170 = smul.addr %s169, 41
        %s171 = smul.addr %s167, 41
        %s172 = sadd.s32 %s170, %s171
        %s173 = smul.addr %s172, 4
        %s174 = scalar_lea.vmem %s0, %s173
        %p175 = pneg %p52
        %p176 = pneg %p49
        %p177 = pneg %p73
        %p178 = pneg %p70
        %p179 = pneg %p94
        %p180 = pneg %p91
        %p181 = pneg %p122
        %p182 = pneg %p119
        %s183 = sand.u32 %s109, 1
        %s184 = scalar_lea.sflag [#allocation4], %s183
        %s185 = sand.u32 %s109, 1
        %s186 = smul.addr %s185, 36
        %s187 = scalar_lea.vmem [#allocation3], %s186
        %p188 = scmp.lt.s32.totalorder %s21, 3
        %s189 = scalar_select %p188, %s21, 3
        %p190 = scmp.lt.s32.totalorder %s22, 0
        %s191 = scalar_select %p190, %s22, 0
        %s192 = smul.addr %s191, 41
        %s193 = smul.addr %s189, 41
        %s194 = sadd.s32 %s192, %s193
        %s195 = smul.addr %s194, 4
        %s196 = scalar_lea.vmem %s0, %s195
        %v198 = vld [vmem:[%s196] sm:$0xf]
        %v199 = vld [vmem:[%s196 + $0x4] sm:$0xf]
        %v200 = vld [vmem:[%s196 + $0x8] sm:$0xf]
        %v201 = vld [vmem:[%s196 + $0xc] sm:$0xf]
        %v202 = vld [vmem:[%s196 + $0x10] sm:$0xf]
        %v203 = vld [vmem:[%s196 + $0x14] sm:$0xf]
        %v204 = vld [vmem:[%s196 + $0x18] sm:$0xf]
        %v205 = vld [vmem:[%s196 + $0x1c] sm:$0xf]
        %v206 = vld [vmem:[%s196 + $0x20] sm:$0xf]
        %vm207 = vcmask 27648
        %208 = vst.msk [vmem:[#allocation2] sm:$0xf] %vm207, %v198
        %209 = vst.msk [vmem:[#allocation2 + $0x4] sm:$0xf] %vm207, %v199
        %210 = vst.msk [vmem:[#allocation2 + $0x8] sm:$0xf] %vm207, %v200
        %211 = vst.msk [vmem:[#allocation2 + $0xc] sm:$0xf] %vm207, %v201
        %212 = vst.msk [vmem:[#allocation2 + $0x10] sm:$0xf] %vm207, %v202
        %213 = vst.msk [vmem:[#allocation2 + $0x14] sm:$0xf] %vm207, %v203
        %214 = vst.msk [vmem:[#allocation2 + $0x18] sm:$0xf] %vm207, %v204
        %215 = vst.msk [vmem:[#allocation2 + $0x1c] sm:$0xf] %vm207, %v205
        %216 = vst.msk [vmem:[#allocation2 + $0x20] sm:$0xf] %vm207, %v206
        %v217 = vld [vmem:[%s196 + $0x28] sm:$0xe]
        %v218 = vld [vmem:[%s196 + $0x2c] sm:$0xf]
        %v219 = vld [vmem:[%s196 + $0x30] sm:$0xf]
        %v220 = vld [vmem:[%s196 + $0x34] sm:$0xf]
        %v221 = vld [vmem:[%s196 + $0x38] sm:$0xf]
        %v222 = vld [vmem:[%s196 + $0x3c] sm:$0xf]
        %v223 = vld [vmem:[%s196 + $0x40] sm:$0xf]
        %v224 = vld [vmem:[%s196 + $0x44] sm:$0xf]
        %v225 = vld [vmem:[%s196 + $0x48] sm:$0xf]
        %v226 = vld [vmem:[%s196 + $0x4c] sm:$0x1]
        %vm237 = vcmask 1042432
        %vm238 = vcmask 1046532
        %vm239 = vmor %vm237, %vm238
        %v240 = vrot.slane %v217, 5
        %v241 = vrot.slane %v240, 4
        %v242 = vrot.slane %v218, 5
        %v243 = vsel %vm239, %v241, %v242
        %v244 = vrot.slane %v242, 4
        %v245 = vrot.slane %v219, 5
        %v246 = vsel %vm239, %v244, %v245
        %v247 = vrot.slane %v245, 4
        %v248 = vrot.slane %v220, 5
        %v249 = vsel %vm239, %v247, %v248
        %v250 = vrot.slane %v248, 4
        %v251 = vrot.slane %v221, 5
        %v252 = vsel %vm239, %v250, %v251
        %v253 = vrot.slane %v251, 4
        %v254 = vrot.slane %v222, 5
        %v255 = vsel %vm239, %v253, %v254
        %v256 = vrot.slane %v254, 4
        %v257 = vrot.slane %v223, 5
        %v258 = vsel %vm239, %v256, %v257
        %v259 = vrot.slane %v257, 4
        %v260 = vrot.slane %v224, 5
        %v261 = vsel %vm239, %v259, %v260
        %v262 = vrot.slane %v260, 4
        %v263 = vrot.slane %v225, 5
        %v264 = vsel %vm239, %v262, %v263
        %v265 = vrot.slane %v263, 4
        %v266 = vrot.slane %v226, 5
        %v267 = vsel %vm239, %v265, %v266
        %268 = vrot.lane.b32.xlu0 %v243, 4
        %v269 = vpop.permute.xlu0 %268
        %270 = vrot.lane.b32.xlu0 %v246, 4
        %v271 = vpop.permute.xlu0 %270
        %272 = vrot.lane.b32.xlu0 %v249, 4
        %v273 = vpop.permute.xlu0 %272
        %274 = vrot.lane.b32.xlu0 %v252, 4
        %v275 = vpop.permute.xlu0 %274
        %276 = vrot.lane.b32.xlu0 %v255, 4
        %v277 = vpop.permute.xlu0 %276
        %278 = vrot.lane.b32.xlu0 %v258, 4
        %v279 = vpop.permute.xlu0 %278
        %280 = vrot.lane.b32.xlu0 %v261, 4
        %v281 = vpop.permute.xlu0 %280
        %282 = vrot.lane.b32.xlu0 %v264, 4
        %v283 = vpop.permute.xlu0 %282
        %284 = vrot.lane.b32.xlu0 %v267, 4
        %v285 = vpop.permute.xlu0 %284
        %vm295 = vcmask 60448
        %296 = vst.msk [vmem:[#allocation2] sm:$0xf] %vm295, %v269
        %297 = vst.msk [vmem:[#allocation2 + $0x4] sm:$0xf] %vm295, %v271
        %298 = vst.msk [vmem:[#allocation2 + $0x8] sm:$0xf] %vm295, %v273
        %299 = vst.msk [vmem:[#allocation2 + $0xc] sm:$0xf] %vm295, %v275
        %300 = vst.msk [vmem:[#allocation2 + $0x10] sm:$0xf] %vm295, %v277
        %301 = vst.msk [vmem:[#allocation2 + $0x14] sm:$0xf] %vm295, %v279
        %302 = vst.msk [vmem:[#allocation2 + $0x18] sm:$0xf] %vm295, %v281
        %303 = vst.msk [vmem:[#allocation2 + $0x1c] sm:$0xf] %vm295, %v283
        %304 = vst.msk [vmem:[#allocation2 + $0x20] sm:$0xf] %vm295, %v285
        %v305 = vld [vmem:[%s196] sm:$0xf]
        %v306 = vld [vmem:[%s196 + $0x4] sm:$0xf]
        %v307 = vld [vmem:[%s196 + $0x8] sm:$0xf]
        %v308 = vld [vmem:[%s196 + $0xc] sm:$0xf]
        %v309 = vld [vmem:[%s196 + $0x10] sm:$0xf]
        %v310 = vld [vmem:[%s196 + $0x14] sm:$0xf]
        %v311 = vld [vmem:[%s196 + $0x18] sm:$0xf]
        %v312 = vld [vmem:[%s196 + $0x1c] sm:$0xf]
        %v313 = vld [vmem:[%s196 + $0x20] sm:$0xf]
        %v314 = vld [vmem:[%s196 + $0x24] sm:$0x1]
        %vm315 = vsmask.f32 3328
        %vm316 = vsmask.f32 7440
        %vm317 = vmor %vm315, %vm316
        %v319 = vshrl.u32 %v305, 16
        %v321 = vrot.slane %v319, 4
        %v322 = vshll.u32 %v305, 16
        %v324 = vrot.slane %v322, 5
        %v325 = vor.u32 %v321, %v324
        %v326 = vrot.slane %v325, 4
        %v328 = vshll.u32 %v306, 16
        %v330 = vrot.slane %v328, 5
        %v331 = vsel %vm317, %v326, %v330
        %v332 = vshrl.u32 %v306, 16
        %v334 = vrot.slane %v332, 4
        %v335 = vor.u32 %v334, %v330
        %v336 = vrot.slane %v335, 4
        %v338 = vshll.u32 %v307, 16
        %v340 = vrot.slane %v338, 5
        %v341 = vsel %vm317, %v336, %v340
        %v342 = vshrl.u32 %v307, 16
        %v344 = vrot.slane %v342, 4
        %v345 = vor.u32 %v344, %v340
        %v346 = vrot.slane %v345, 4
        %v348 = vshll.u32 %v308, 16
        %v350 = vrot.slane %v348, 5
        %v351 = vsel %vm317, %v346, %v350
        %v352 = vshrl.u32 %v308, 16
        %v354 = vrot.slane %v352, 4
        %v355 = vor.u32 %v354, %v350
        %v356 = vrot.slane %v355, 4
        %v358 = vshll.u32 %v309, 16
        %v360 = vrot.slane %v358, 5
        %v361 = vsel %vm317, %v356, %v360
        %v362 = vshrl.u32 %v309, 16
        %v364 = vrot.slane %v362, 4
        %v365 = vor.u32 %v364, %v360
        %v366 = vrot.slane %v365, 4
        %v368 = vshll.u32 %v310, 16
        %v370 = vrot.slane %v368, 5
        %v371 = vsel %vm317, %v366, %v370
        %v372 = vshrl.u32 %v310, 16
        %v374 = vrot.slane %v372, 4
        %v375 = vor.u32 %v374, %v370
        %v376 = vrot.slane %v375, 4
        %v378 = vshll.u32 %v311, 16
        %v380 = vrot.slane %v378, 5
        %v381 = vsel %vm317, %v376, %v380
        %v382 = vshrl.u32 %v311, 16
        %v384 = vrot.slane %v382, 4
        %v385 = vor.u32 %v384, %v380
        %v386 = vrot.slane %v385, 4
        %v388 = vshll.u32 %v312, 16
        %v390 = vrot.slane %v388, 5
        %v391 = vsel %vm317, %v386, %v390
        %v392 = vshrl.u32 %v312, 16
        %v394 = vrot.slane %v392, 4
        %v395 = vor.u32 %v394, %v390
        %v396 = vrot.slane %v395, 4
        %v398 = vshll.u32 %v313, 16
        %v400 = vrot.slane %v398, 5
        %v401 = vsel %vm317, %v396, %v400
        %v402 = vshrl.u32 %v313, 16
        %v404 = vrot.slane %v402, 4
        %v405 = vor.u32 %v404, %v400
        %v406 = vrot.slane %v405, 4
        %v408 = vshll.u32 %v314, 16
        %v410 = vrot.slane %v408, 5
        %v411 = vsel %vm317, %v406, %v410
        %412 = vrot.lane.b32.xlu0 %v331, 8
        %v413 = vpop.permute.xlu0 %412
        %414 = vrot.lane.b32.xlu0 %v341, 8
        %v415 = vpop.permute.xlu0 %414
        %416 = vrot.lane.b32.xlu0 %v351, 8
        %v417 = vpop.permute.xlu0 %416
        %418 = vrot.lane.b32.xlu0 %v361, 8
        %v419 = vpop.permute.xlu0 %418
        %420 = vrot.lane.b32.xlu0 %v371, 8
        %v421 = vpop.permute.xlu0 %420
        %422 = vrot.lane.b32.xlu0 %v381, 8
        %v423 = vpop.permute.xlu0 %422
        %424 = vrot.lane.b32.xlu0 %v391, 8
        %v425 = vpop.permute.xlu0 %424
        %426 = vrot.lane.b32.xlu0 %v401, 8
        %v427 = vpop.permute.xlu0 %426
        %428 = vrot.lane.b32.xlu0 %v411, 8
        %v429 = vpop.permute.xlu0 %428
        %vm439 = vcmask 93248
        %440 = vst.msk [vmem:[#allocation2] sm:$0xf] %vm439, %v413
        %441 = vst.msk [vmem:[#allocation2 + $0x4] sm:$0xf] %vm439, %v415
        %442 = vst.msk [vmem:[#allocation2 + $0x8] sm:$0xf] %vm439, %v417
        %443 = vst.msk [vmem:[#allocation2 + $0xc] sm:$0xf] %vm439, %v419
        %444 = vst.msk [vmem:[#allocation2 + $0x10] sm:$0xf] %vm439, %v421
        %445 = vst.msk [vmem:[#allocation2 + $0x14] sm:$0xf] %vm439, %v423
        %446 = vst.msk [vmem:[#allocation2 + $0x18] sm:$0xf] %vm439, %v425
        %447 = vst.msk [vmem:[#allocation2 + $0x1c] sm:$0xf] %vm439, %v427
        %448 = vst.msk [vmem:[#allocation2 + $0x20] sm:$0xf] %vm439, %v429
        %v449 = vld [vmem:[%s196 + $0x50] sm:$0xc]
        %v450 = vld [vmem:[%s196 + $0x54] sm:$0xf]
        %v451 = vld [vmem:[%s196 + $0x58] sm:$0xf]
        %v452 = vld [vmem:[%s196 + $0x5c] sm:$0xf]
        %v453 = vld [vmem:[%s196 + $0x60] sm:$0xf]
        %v454 = vld [vmem:[%s196 + $0x64] sm:$0xf]
        %v455 = vld [vmem:[%s196 + $0x68] sm:$0xf]
        %v456 = vld [vmem:[%s196 + $0x6c] sm:$0xf]
        %v457 = vld [vmem:[%s196 + $0x70] sm:$0xf]
        %v458 = vld [vmem:[%s196 + $0x74] sm:$0x3]
        %vm469 = vcmask 1041408
        %vm470 = vcmask 1045508
        %vm471 = vmor %vm469, %vm470
        %v472 = vrot.slane %v449, 6
        %v473 = vrot.slane %v472, 4
        %v474 = vrot.slane %v450, 6
        %v475 = vsel %vm471, %v473, %v474
        %v476 = vrot.slane %v474, 4
        %v477 = vrot.slane %v451, 6
        %v478 = vsel %vm471, %v476, %v477
        %v479 = vrot.slane %v477, 4
        %v480 = vrot.slane %v452, 6
        %v481 = vsel %vm471, %v479, %v480
        %v482 = vrot.slane %v480, 4
        %v483 = vrot.slane %v453, 6
        %v484 = vsel %vm471, %v482, %v483
        %v485 = vrot.slane %v483, 4
        %v486 = vrot.slane %v454, 6
        %v487 = vsel %vm471, %v485, %v486
        %v488 = vrot.slane %v486, 4
        %v489 = vrot.slane %v455, 6
        %v490 = vsel %vm471, %v488, %v489
        %v491 = vrot.slane %v489, 4
        %v492 = vrot.slane %v456, 6
        %v493 = vsel %vm471, %v491, %v492
        %v494 = vrot.slane %v492, 4
        %v495 = vrot.slane %v457, 6
        %v496 = vsel %vm471, %v494, %v495
        %v497 = vrot.slane %v495, 4
        %v498 = vrot.slane %v458, 6
        %v499 = vsel %vm471, %v497, %v498
        %500 = vrot.lane.b32.xlu0 %v475, 12
        %v501 = vpop.permute.xlu0 %500
        %502 = vrot.lane.b32.xlu0 %v478, 12
        %v503 = vpop.permute.xlu0 %502
        %504 = vrot.lane.b32.xlu0 %v481, 12
        %v505 = vpop.permute.xlu0 %504
        %506 = vrot.lane.b32.xlu0 %v484, 12
        %v507 = vpop.permute.xlu0 %506
        %508 = vrot.lane.b32.xlu0 %v487, 12
        %v509 = vpop.permute.xlu0 %508
        %510 = vrot.lane.b32.xlu0 %v490, 12
        %v511 = vpop.permute.xlu0 %510
        %512 = vrot.lane.b32.xlu0 %v493, 12
        %v513 = vpop.permute.xlu0 %512
        %514 = vrot.lane.b32.xlu0 %v496, 12
        %v515 = vpop.permute.xlu0 %514
        %516 = vrot.lane.b32.xlu0 %v499, 12
        %v517 = vpop.permute.xlu0 %516
        %vm527 = vcmask 126048
        %528 = vst.msk [vmem:[#allocation2] sm:$0xf] %vm527, %v501
        %529 = vst.msk [vmem:[#allocation2 + $0x4] sm:$0xf] %vm527, %v503
        %530 = vst.msk [vmem:[#allocation2 + $0x8] sm:$0xf] %vm527, %v505
        %531 = vst.msk [vmem:[#allocation2 + $0xc] sm:$0xf] %vm527, %v507
        %532 = vst.msk [vmem:[#allocation2 + $0x10] sm:$0xf] %vm527, %v509
        %533 = vst.msk [vmem:[#allocation2 + $0x14] sm:$0xf] %vm527, %v511
        %534 = vst.msk [vmem:[#allocation2 + $0x18] sm:$0xf] %vm527, %v513
        %535 = vst.msk [vmem:[#allocation2 + $0x1c] sm:$0xf] %vm527, %v515
        %536 = vst.msk [vmem:[#allocation2 + $0x20] sm:$0xf] %vm527, %v517
        %v537 = vld [vmem:[%s196 + $0x78] sm:$0x8]
        %v538 = vld [vmem:[%s196 + $0x7c] sm:$0xf]
        %v539 = vld [vmem:[%s196 + $0x80] sm:$0xf]
        %v540 = vld [vmem:[%s196 + $0x84] sm:$0xf]
        %v541 = vld [vmem:[%s196 + $0x88] sm:$0xf]
        %v542 = vld [vmem:[%s196 + $0x8c] sm:$0xf]
        %v543 = vld [vmem:[%s196 + $0x90] sm:$0xf]
        %v544 = vld [vmem:[%s196 + $0x94] sm:$0xf]
        %v545 = vld [vmem:[%s196 + $0x98] sm:$0xf]
        %v546 = vld [vmem:[%s196 + $0x9c] sm:$0x7]
        %vm557 = vcmask 1040384
        %vm558 = vcmask 1044484
        %vm559 = vmor %vm557, %vm558
        %v560 = vrot.slane %v537, 7
        %v561 = vrot.slane %v560, 4
        %v562 = vrot.slane %v538, 7
        %v563 = vsel %vm559, %v561, %v562
        %v564 = vrot.slane %v562, 4
        %v565 = vrot.slane %v539, 7
        %v566 = vsel %vm559, %v564, %v565
        %v567 = vrot.slane %v565, 4
        %v568 = vrot.slane %v540, 7
        %v569 = vsel %vm559, %v567, %v568
        %v570 = vrot.slane %v568, 4
        %v571 = vrot.slane %v541, 7
        %v572 = vsel %vm559, %v570, %v571
        %v573 = vrot.slane %v571, 4
        %v574 = vrot.slane %v542, 7
        %v575 = vsel %vm559, %v573, %v574
        %v576 = vrot.slane %v574, 4
        %v577 = vrot.slane %v543, 7
        %v578 = vsel %vm559, %v576, %v577
        %v579 = vrot.slane %v577, 4
        %v580 = vrot.slane %v544, 7
        %v581 = vsel %vm559, %v579, %v580
        %v582 = vrot.slane %v580, 4
        %v583 = vrot.slane %v545, 7
        %v584 = vsel %vm559, %v582, %v583
        %v585 = vrot.slane %v583, 4
        %v586 = vrot.slane %v546, 7
        %v587 = vsel %vm559, %v585, %v586
        %588 = vrot.lane.b32.xlu0 %v563, 16
        %v589 = vpop.permute.xlu0 %588
        %590 = vrot.lane.b32.xlu0 %v566, 16
        %v591 = vpop.permute.xlu0 %590
        %592 = vrot.lane.b32.xlu0 %v569, 16
        %v593 = vpop.permute.xlu0 %592
        %594 = vrot.lane.b32.xlu0 %v572, 16
        %v595 = vpop.permute.xlu0 %594
        %596 = vrot.lane.b32.xlu0 %v575, 16
        %v597 = vpop.permute.xlu0 %596
        %598 = vrot.lane.b32.xlu0 %v578, 16
        %v599 = vpop.permute.xlu0 %598
        %600 = vrot.lane.b32.xlu0 %v581, 16
        %v601 = vpop.permute.xlu0 %600
        %602 = vrot.lane.b32.xlu0 %v584, 16
        %v603 = vpop.permute.xlu0 %602
        %604 = vrot.lane.b32.xlu0 %v587, 16
        %v605 = vpop.permute.xlu0 %604
        %vm615 = vcmask 158848
        %616 = vst.msk [vmem:[#allocation2] sm:$0xf] %vm615, %v589
        %617 = vst.msk [vmem:[#allocation2 + $0x4] sm:$0xf] %vm615, %v591
        %618 = vst.msk [vmem:[#allocation2 + $0x8] sm:$0xf] %vm615, %v593
        %619 = vst.msk [vmem:[#allocation2 + $0xc] sm:$0xf] %vm615, %v595
        %620 = vst.msk [vmem:[#allocation2 + $0x10] sm:$0xf] %vm615, %v597
        %621 = vst.msk [vmem:[#allocation2 + $0x14] sm:$0xf] %vm615, %v599
        %622 = vst.msk [vmem:[#allocation2 + $0x18] sm:$0xf] %vm615, %v601
        %623 = vst.msk [vmem:[#allocation2 + $0x1c] sm:$0xf] %vm615, %v603
        %624 = vst.msk [vmem:[#allocation2 + $0x20] sm:$0xf] %vm615, %v605
        %v625 = vld [vmem:[%s196 + $0x50] sm:$0xc]
        %v626 = vld [vmem:[%s196 + $0x54] sm:$0xf]
        %v627 = vld [vmem:[%s196 + $0x58] sm:$0xf]
        %v628 = vld [vmem:[%s196 + $0x5c] sm:$0xf]
        %v629 = vld [vmem:[%s196 + $0x60] sm:$0xf]
        %v630 = vld [vmem:[%s196 + $0x64] sm:$0xf]
        %v631 = vld [vmem:[%s196 + $0x68] sm:$0xf]
        %v632 = vld [vmem:[%s196 + $0x6c] sm:$0xf]
        %v633 = vld [vmem:[%s196 + $0x70] sm:$0xf]
        %v634 = vld [vmem:[%s196 + $0x74] sm:$0x7]
        %vm635 = vsmask.f32 1280
        %vm636 = vsmask.f32 5392
        %vm637 = vmor %vm635, %vm636
        %v639 = vshrl.u32 %v625, 16
        %v641 = vrot.slane %v639, 6
        %v642 = vshll.u32 %v625, 16
        %v644 = vrot.slane %v642, 7
        %v645 = vor.u32 %v641, %v644
        %v646 = vrot.slane %v645, 4
        %v648 = vshrl.u32 %v626, 16
        %v650 = vrot.slane %v648, 6
        %v651 = vshll.u32 %v626, 16
        %v653 = vrot.slane %v651, 7
        %v654 = vor.u32 %v650, %v653
        %v655 = vsel %vm637, %v646, %v654
        %v656 = vrot.slane %v654, 4
        %v658 = vshrl.u32 %v627, 16
        %v660 = vrot.slane %v658, 6
        %v661 = vshll.u32 %v627, 16
        %v663 = vrot.slane %v661, 7
        %v664 = vor.u32 %v660, %v663
        %v665 = vsel %vm637, %v656, %v664
        %v666 = vrot.slane %v664, 4
        %v668 = vshrl.u32 %v628, 16
        %v670 = vrot.slane %v668, 6
        %v671 = vshll.u32 %v628, 16
        %v673 = vrot.slane %v671, 7
        %v674 = vor.u32 %v670, %v673
        %v675 = vsel %vm637, %v666, %v674
        %v676 = vrot.slane %v674, 4
        %v678 = vshrl.u32 %v629, 16
        %v680 = vrot.slane %v678, 6
        %v681 = vshll.u32 %v629, 16
        %v683 = vrot.slane %v681, 7
        %v684 = vor.u32 %v680, %v683
        %v685 = vsel %vm637, %v676, %v684
        %v686 = vrot.slane %v684, 4
        %v688 = vshrl.u32 %v630, 16
        %v690 = vrot.slane %v688, 6
        %v691 = vshll.u32 %v630, 16
        %v693 = vrot.slane %v691, 7
        %v694 = vor.u32 %v690, %v693
        %v695 = vsel %vm637, %v686, %v694
        %v696 = vrot.slane %v694, 4
        %v698 = vshrl.u32 %v631, 16
        %v700 = vrot.slane %v698, 6
        %v701 = vshll.u32 %v631, 16
        %v703 = vrot.slane %v701, 7
        %v704 = vor.u32 %v700, %v703
        %v705 = vsel %vm637, %v696, %v704
        %v706 = vrot.slane %v704, 4
        %v708 = vshrl.u32 %v632, 16
        %v710 = vrot.slane %v708, 6
        %v711 = vshll.u32 %v632, 16
        %v713 = vrot.slane %v711, 7
        %v714 = vor.u32 %v710, %v713
        %v715 = vsel %vm637, %v706, %v714
        %v716 = vrot.slane %v714, 4
        %v718 = vshrl.u32 %v633, 16
        %v720 = vrot.slane %v718, 6
        %v721 = vshll.u32 %v633, 16
        %v723 = vrot.slane %v721, 7
        %v724 = vor.u32 %v720, %v723
        %v725 = vsel %vm637, %v716, %v724
        %v726 = vrot.slane %v724, 4
        %v728 = vshrl.u32 %v634, 16
        %v730 = vrot.slane %v728, 6
        %v731 = vshll.u32 %v634, 16
        %v733 = vrot.slane %v731, 7
        %v734 = vor.u32 %v730, %v733
        %v735 = vsel %vm637, %v726, %v734
        %736 = vrot.lane.b32.xlu0 %v655, 20
        %v737 = vpop.permute.xlu0 %736
        %738 = vrot.lane.b32.xlu0 %v665, 20
        %v739 = vpop.permute.xlu0 %738
        %740 = vrot.lane.b32.xlu0 %v675, 20
        %v741 = vpop.permute.xlu0 %740
        %742 = vrot.lane.b32.xlu0 %v685, 20
        %v743 = vpop.permute.xlu0 %742
        %744 = vrot.lane.b32.xlu0 %v695, 20
        %v745 = vpop.permute.xlu0 %744
        %746 = vrot.lane.b32.xlu0 %v705, 20
        %v747 = vpop.permute.xlu0 %746
        %748 = vrot.lane.b32.xlu0 %v715, 20
        %v749 = vpop.permute.xlu0 %748
        %750 = vrot.lane.b32.xlu0 %v725, 20
        %v751 = vpop.permute.xlu0 %750
        %752 = vrot.lane.b32.xlu0 %v735, 20
        %v753 = vpop.permute.xlu0 %752
        %vm763 = vcmask 191648
        %764 = vst.msk [vmem:[#allocation2] sm:$0xf] %vm763, %v737
        %765 = vst.msk [vmem:[#allocation2 + $0x4] sm:$0xf] %vm763, %v739
        %766 = vst.msk [vmem:[#allocation2 + $0x8] sm:$0xf] %vm763, %v741
        %767 = vst.msk [vmem:[#allocation2 + $0xc] sm:$0xf] %vm763, %v743
        %768 = vst.msk [vmem:[#allocation2 + $0x10] sm:$0xf] %vm763, %v745
        %769 = vst.msk [vmem:[#allocation2 + $0x14] sm:$0xf] %vm763, %v747
        %770 = vst.msk [vmem:[#allocation2 + $0x18] sm:$0xf] %vm763, %v749
        %771 = vst.msk [vmem:[#allocation2 + $0x1c] sm:$0xf] %vm763, %v751
        %772 = vst.msk [vmem:[#allocation2 + $0x20] sm:$0xf] %vm763, %v753
        %v773 = vld [vmem:[%s196 + $0x4] sm:$0xf]
        %v774 = vld [vmem:[%s196 + $0x8] sm:$0xf]
        %v775 = vld [vmem:[%s196 + $0xc] sm:$0xf]
        %v776 = vld [vmem:[%s196 + $0x10] sm:$0xf]
        %v777 = vld [vmem:[%s196 + $0x14] sm:$0xf]
        %v778 = vld [vmem:[%s196 + $0x18] sm:$0xf]
        %v779 = vld [vmem:[%s196 + $0x1c] sm:$0xf]
        %v780 = vld [vmem:[%s196 + $0x20] sm:$0xf]
        %v781 = vld [vmem:[%s196 + $0x24] sm:$0xf]
        %v782 = vld [vmem:[%s196 + $0x28] sm:$0x1]
        %v784 = vshrl.u32 %v773, 16
        %v786 = vrot.slane %v784, 4
        %v787 = vshll.u32 %v773, 16
        %v789 = vrot.slane %v787, 5
        %v790 = vor.u32 %v786, %v789
        %v791 = vrot.slane %v790, 4
        %v793 = vshll.u32 %v774, 16
        %v795 = vrot.slane %v793, 5
        %v796 = vsel %vm317, %v791, %v795
        %v797 = vshrl.u32 %v774, 16
        %v799 = vrot.slane %v797, 4
        %v800 = vor.u32 %v799, %v795
        %v801 = vrot.slane %v800, 4
        %v803 = vshll.u32 %v775, 16
        %v805 = vrot.slane %v803, 5
        %v806 = vsel %vm317, %v801, %v805
        %v807 = vshrl.u32 %v775, 16
        %v809 = vrot.slane %v807, 4
        %v810 = vor.u32 %v809, %v805
        %v811 = vrot.slane %v810, 4
        %v813 = vshll.u32 %v776, 16
        %v815 = vrot.slane %v813, 5
        %v816 = vsel %vm317, %v811, %v815
        %v817 = vshrl.u32 %v776, 16
        %v819 = vrot.slane %v817, 4
        %v820 = vor.u32 %v819, %v815
        %v821 = vrot.slane %v820, 4
        %v823 = vshll.u32 %v777, 16
        %v825 = vrot.slane %v823, 5
        %v826 = vsel %vm317, %v821, %v825
        %v827 = vshrl.u32 %v777, 16
        %v829 = vrot.slane %v827, 4
        %v830 = vor.u32 %v829, %v825
        %v831 = vrot.slane %v830, 4
        %v833 = vshll.u32 %v778, 16
        %v835 = vrot.slane %v833, 5
        %v836 = vsel %vm317, %v831, %v835
        %v837 = vshrl.u32 %v778, 16
        %v839 = vrot.slane %v837, 4
        %v840 = vor.u32 %v839, %v835
        %v841 = vrot.slane %v840, 4
        %v843 = vshll.u32 %v779, 16
        %v845 = vrot.slane %v843, 5
        %v846 = vsel %vm317, %v841, %v845
        %v847 = vshrl.u32 %v779, 16
        %v849 = vrot.slane %v847, 4
        %v850 = vor.u32 %v849, %v845
        %v851 = vrot.slane %v850, 4
        %v853 = vshll.u32 %v780, 16
        %v855 = vrot.slane %v853, 5
        %v856 = vsel %vm317, %v851, %v855
        %v857 = vshrl.u32 %v780, 16
        %v859 = vrot.slane %v857, 4
        %v860 = vor.u32 %v859, %v855
        %v861 = vrot.slane %v860, 4
        %v863 = vshll.u32 %v781, 16
        %v865 = vrot.slane %v863, 5
        %v866 = vsel %vm317, %v861, %v865
        %v867 = vshrl.u32 %v781, 16
        %v869 = vrot.slane %v867, 4
        %v870 = vor.u32 %v869, %v865
        %v871 = vrot.slane %v870, 4
        %v873 = vshll.u32 %v782, 16
        %v875 = vrot.slane %v873, 5
        %v876 = vsel %vm317, %v871, %v875
        %877 = vrot.lane.b32.xlu0 %v796, 24
        %v878 = vpop.permute.xlu0 %877
        %879 = vrot.lane.b32.xlu0 %v806, 24
        %v880 = vpop.permute.xlu0 %879
        %881 = vrot.lane.b32.xlu0 %v816, 24
        %v882 = vpop.permute.xlu0 %881
        %883 = vrot.lane.b32.xlu0 %v826, 24
        %v884 = vpop.permute.xlu0 %883
        %885 = vrot.lane.b32.xlu0 %v836, 24
        %v886 = vpop.permute.xlu0 %885
        %887 = vrot.lane.b32.xlu0 %v846, 24
        %v888 = vpop.permute.xlu0 %887
        %889 = vrot.lane.b32.xlu0 %v856, 24
        %v890 = vpop.permute.xlu0 %889
        %891 = vrot.lane.b32.xlu0 %v866, 24
        %v892 = vpop.permute.xlu0 %891
        %893 = vrot.lane.b32.xlu0 %v876, 24
        %v894 = vpop.permute.xlu0 %893
        %vm904 = vcmask 224448
        %905 = vst.msk [vmem:[#allocation2] sm:$0xf] %vm904, %v878
        %906 = vst.msk [vmem:[#allocation2 + $0x4] sm:$0xf] %vm904, %v880
        %907 = vst.msk [vmem:[#allocation2 + $0x8] sm:$0xf] %vm904, %v882
        %908 = vst.msk [vmem:[#allocation2 + $0xc] sm:$0xf] %vm904, %v884
        %909 = vst.msk [vmem:[#allocation2 + $0x10] sm:$0xf] %vm904, %v886
        %910 = vst.msk [vmem:[#allocation2 + $0x14] sm:$0xf] %vm904, %v888
        %911 = vst.msk [vmem:[#allocation2 + $0x18] sm:$0xf] %vm904, %v890
        %912 = vst.msk [vmem:[#allocation2 + $0x1c] sm:$0xf] %vm904, %v892
        %913 = vst.msk [vmem:[#allocation2 + $0x20] sm:$0xf] %vm904, %v894
        %v914 = vld [vmem:[%s196 + $0x2c] sm:$0xe]
        %v915 = vld [vmem:[%s196 + $0x30] sm:$0xf]
        %v916 = vld [vmem:[%s196 + $0x34] sm:$0xf]
        %v917 = vld [vmem:[%s196 + $0x38] sm:$0xf]
        %v918 = vld [vmem:[%s196 + $0x3c] sm:$0xf]
        %v919 = vld [vmem:[%s196 + $0x40] sm:$0xf]
        %v920 = vld [vmem:[%s196 + $0x44] sm:$0xf]
        %v921 = vld [vmem:[%s196 + $0x48] sm:$0xf]
        %v922 = vld [vmem:[%s196 + $0x4c] sm:$0xf]
        %v923 = vld [vmem:[%s196 + $0x50] sm:$0x3]
        %vm924 = vsmask.f32 2304
        %vm925 = vsmask.f32 6416
        %vm926 = vmor %vm924, %vm925
        %v928 = vshrl.u32 %v914, 16
        %v930 = vrot.slane %v928, 5
        %v931 = vshll.u32 %v914, 16
        %v933 = vrot.slane %v931, 6
        %v934 = vor.u32 %v930, %v933
        %v935 = vrot.slane %v934, 4
        %v937 = vshrl.u32 %v915, 16
        %v939 = vrot.slane %v937, 5
        %v940 = vshll.u32 %v915, 16
        %v942 = vrot.slane %v940, 6
        %v943 = vor.u32 %v939, %v942
        %v944 = vsel %vm926, %v935, %v943
        %v945 = vrot.slane %v943, 4
        %v947 = vshrl.u32 %v916, 16
        %v949 = vrot.slane %v947, 5
        %v950 = vshll.u32 %v916, 16
        %v952 = vrot.slane %v950, 6
        %v953 = vor.u32 %v949, %v952
        %v954 = vsel %vm926, %v945, %v953
        %v955 = vrot.slane %v953, 4
        %v957 = vshrl.u32 %v917, 16
        %v959 = vrot.slane %v957, 5
        %v960 = vshll.u32 %v917, 16
        %v962 = vrot.slane %v960, 6
        %v963 = vor.u32 %v959, %v962
        %v964 = vsel %vm926, %v955, %v963
        %v965 = vrot.slane %v963, 4
        %v967 = vshrl.u32 %v918, 16
        %v969 = vrot.slane %v967, 5
        %v970 = vshll.u32 %v918, 16
        %v972 = vrot.slane %v970, 6
        %v973 = vor.u32 %v969, %v972
        %v974 = vsel %vm926, %v965, %v973
        %v975 = vrot.slane %v973, 4
        %v977 = vshrl.u32 %v919, 16
        %v979 = vrot.slane %v977, 5
        %v980 = vshll.u32 %v919, 16
        %v982 = vrot.slane %v980, 6
        %v983 = vor.u32 %v979, %v982
        %v984 = vsel %vm926, %v975, %v983
        %v985 = vrot.slane %v983, 4
        %v987 = vshrl.u32 %v920, 16
        %v989 = vrot.slane %v987, 5
        %v990 = vshll.u32 %v920, 16
        %v992 = vrot.slane %v990, 6
        %v993 = vor.u32 %v989, %v992
        %v994 = vsel %vm926, %v985, %v993
        %v995 = vrot.slane %v993, 4
        %v997 = vshrl.u32 %v921, 16
        %v999 = vrot.slane %v997, 5
        %v1000 = vshll.u32 %v921, 16
        %v1002 = vrot.slane %v1000, 6
        %v1003 = vor.u32 %v999, %v1002
        %v1004 = vsel %vm926, %v995, %v1003
        %v1005 = vrot.slane %v1003, 4
        %v1007 = vshrl.u32 %v922, 16
        %v1009 = vrot.slane %v1007, 5
        %v1010 = vshll.u32 %v922, 16
        %v1012 = vrot.slane %v1010, 6
        %v1013 = vor.u32 %v1009, %v1012
        %v1014 = vsel %vm926, %v1005, %v1013
        %v1015 = vrot.slane %v1013, 4
        %v1017 = vshrl.u32 %v923, 16
        %v1019 = vrot.slane %v1017, 5
        %v1020 = vshll.u32 %v923, 16
        %v1022 = vrot.slane %v1020, 6
        %v1023 = vor.u32 %v1019, %v1022
        %v1024 = vsel %vm926, %v1015, %v1023
        %1025 = vrot.lane.b32.xlu0 %v944, 28
        %v1026 = vpop.permute.xlu0 %1025
        %1027 = vrot.lane.b32.xlu0 %v954, 28
        %v1028 = vpop.permute.xlu0 %1027
        %1029 = vrot.lane.b32.xlu0 %v964, 28
        %v1030 = vpop.permute.xlu0 %1029
        %1031 = vrot.lane.b32.xlu0 %v974, 28
        %v1032 = vpop.permute.xlu0 %1031
        %1033 = vrot.lane.b32.xlu0 %v984, 28
        %v1034 = vpop.permute.xlu0 %1033
        %1035 = vrot.lane.b32.xlu0 %v994, 28
        %v1036 = vpop.permute.xlu0 %1035
        %1037 = vrot.lane.b32.xlu0 %v1004, 28
        %v1038 = vpop.permute.xlu0 %1037
        %1039 = vrot.lane.b32.xlu0 %v1014, 28
        %v1040 = vpop.permute.xlu0 %1039
        %1041 = vrot.lane.b32.xlu0 %v1024, 28
        %v1042 = vpop.permute.xlu0 %1041
        %vm1052 = vcmask 257248
        %1053 = vst.msk [vmem:[#allocation2] sm:$0xf] %vm1052, %v1026
        %1054 = vst.msk [vmem:[#allocation2 + $0x4] sm:$0xf] %vm1052, %v1028
        %1055 = vst.msk [vmem:[#allocation2 + $0x8] sm:$0xf] %vm1052, %v1030
        %1056 = vst.msk [vmem:[#allocation2 + $0xc] sm:$0xf] %vm1052, %v1032
        %1057 = vst.msk [vmem:[#allocation2 + $0x10] sm:$0xf] %vm1052, %v1034
        %1058 = vst.msk [vmem:[#allocation2 + $0x14] sm:$0xf] %vm1052, %v1036
        %1059 = vst.msk [vmem:[#allocation2 + $0x18] sm:$0xf] %vm1052, %v1038
        %1060 = vst.msk [vmem:[#allocation2 + $0x1c] sm:$0xf] %vm1052, %v1040
        %1061 = vst.msk [vmem:[#allocation2 + $0x20] sm:$0xf] %vm1052, %v1042
        %v1062 = vld [vmem:[%s196 + $0x4] sm:$0xe]
        %v1063 = vld [vmem:[%s196 + $0x8] sm:$0xf]
        %v1064 = vld [vmem:[%s196 + $0xc] sm:$0xf]
        %v1065 = vld [vmem:[%s196 + $0x10] sm:$0xf]
        %v1066 = vld [vmem:[%s196 + $0x14] sm:$0xf]
        %v1067 = vld [vmem:[%s196 + $0x18] sm:$0xf]
        %v1068 = vld [vmem:[%s196 + $0x1c] sm:$0xf]
        %v1069 = vld [vmem:[%s196 + $0x20] sm:$0xf]
        %v1070 = vld [vmem:[%s196 + $0x24] sm:$0xf]
        %v1071 = vld [vmem:[%s196 + $0x28] sm:$0x1]
        %v1082 = vrot.slane %v1062, 5
        %v1083 = vrot.slane %v1082, 4
        %v1084 = vrot.slane %v1063, 5
        %v1085 = vsel %vm239, %v1083, %v1084
        %v1086 = vrot.slane %v1084, 4
        %v1087 = vrot.slane %v1064, 5
        %v1088 = vsel %vm239, %v1086, %v1087
        %v1089 = vrot.slane %v1087, 4
        %v1090 = vrot.slane %v1065, 5
        %v1091 = vsel %vm239, %v1089, %v1090
        %v1092 = vrot.slane %v1090, 4
        %v1093 = vrot.slane %v1066, 5
        %v1094 = vsel %vm239, %v1092, %v1093
        %v1095 = vrot.slane %v1093, 4
        %v1096 = vrot.slane %v1067, 5
        %v1097 = vsel %vm239, %v1095, %v1096
        %v1098 = vrot.slane %v1096, 4
        %v1099 = vrot.slane %v1068, 5
        %v1100 = vsel %vm239, %v1098, %v1099
        %v1101 = vrot.slane %v1099, 4
        %v1102 = vrot.slane %v1069, 5
        %v1103 = vsel %vm239, %v1101, %v1102
        %v1104 = vrot.slane %v1102, 4
        %v1105 = vrot.slane %v1070, 5
        %v1106 = vsel %vm239, %v1104, %v1105
        %v1107 = vrot.slane %v1105, 4
        %v1108 = vrot.slane %v1071, 5
        %v1109 = vsel %vm239, %v1107, %v1108
        %1110 = vrot.lane.b32.xlu0 %v1085, 32
        %v1111 = vpop.permute.xlu0 %1110
        %1112 = vrot.lane.b32.xlu0 %v1088, 32
        %v1113 = vpop.permute.xlu0 %1112
        %1114 = vrot.lane.b32.xlu0 %v1091, 32
        %v1115 = vpop.permute.xlu0 %1114
        %1116 = vrot.lane.b32.xlu0 %v1094, 32
        %v1117 = vpop.permute.xlu0 %1116
        %1118 = vrot.lane.b32.xlu0 %v1097, 32
        %v1119 = vpop.permute.xlu0 %1118
        %1120 = vrot.lane.b32.xlu0 %v1100, 32
        %v1121 = vpop.permute.xlu0 %1120
        %1122 = vrot.lane.b32.xlu0 %v1103, 32
        %v1123 = vpop.permute.xlu0 %1122
        %1124 = vrot.lane.b32.xlu0 %v1106, 32
        %v1125 = vpop.permute.xlu0 %1124
        %1126 = vrot.lane.b32.xlu0 %v1109, 32
        %v1127 = vpop.permute.xlu0 %1126
        %vm1137 = vcmask 290048
        %1138 = vst.msk [vmem:[#allocation2] sm:$0xf] %vm1137, %v1111
        %1139 = vst.msk [vmem:[#allocation2 + $0x4] sm:$0xf] %vm1137, %v1113
        %1140 = vst.msk [vmem:[#allocation2 + $0x8] sm:$0xf] %vm1137, %v1115
        %1141 = vst.msk [vmem:[#allocation2 + $0xc] sm:$0xf] %vm1137, %v1117
        %1142 = vst.msk [vmem:[#allocation2 + $0x10] sm:$0xf] %vm1137, %v1119
        %1143 = vst.msk [vmem:[#allocation2 + $0x14] sm:$0xf] %vm1137, %v1121
        %1144 = vst.msk [vmem:[#allocation2 + $0x18] sm:$0xf] %vm1137, %v1123
        %1145 = vst.msk [vmem:[#allocation2 + $0x1c] sm:$0xf] %vm1137, %v1125
        %1146 = vst.msk [vmem:[#allocation2 + $0x20] sm:$0xf] %vm1137, %v1127
        %v1147 = vld [vmem:[#allocation2] sm:$0xf]
        %v1148 = vld [vmem:[#allocation2 + $0x4] sm:$0xf]
        %v1149 = vld [vmem:[#allocation2 + $0x8] sm:$0xf]
        %v1150 = vld [vmem:[#allocation2 + $0xc] sm:$0xf]
        %v1151 = vld [vmem:[#allocation2 + $0x10] sm:$0xf]
        %v1152 = vld [vmem:[#allocation2 + $0x14] sm:$0xf]
        %v1153 = vld [vmem:[#allocation2 + $0x18] sm:$0xf]
        %v1154 = vld [vmem:[#allocation2 + $0x1c] sm:$0xf]
        %v1155 = vld [vmem:[#allocation2 + $0x20] sm:$0xf]
        %v1156 = vld [vmem:[%s1] sm:$0xf]
        %v1157 = vld [vmem:[%s1 + $0x4] sm:$0xf]
        %v1158 = vld [vmem:[%s1 + $0x8] sm:$0xf]
        %v1159 = vld [vmem:[%s1 + $0xc] sm:$0xf]
        %v1160 = vld [vmem:[%s1 + $0x10] sm:$0x3]
        %v1161 = vld [vmem:[%s2] sm:$0x1]
        %v1163 = vperm.slane %v1161, 0
        %v1174 = vunpack.c.l.b16 %v1147
        %v1175 = vunpack.c.l.b16 %v1148
        %v1176 = vunpack.c.l.b16 %v1149
        %v1177 = vunpack.c.l.b16 %v1150
        %v1178 = vunpack.c.l.b16 %v1151
        %v1179 = vunpack.c.l.b16 %v1152
        %v1180 = vunpack.c.l.b16 %v1153
        %v1181 = vunpack.c.l.b16 %v1154
        %v1182 = vunpack.c.l.b16 %v1155
        %v1183 = vpack.c.b16 %v1175, %v1174
        %v1184 = vpack.c.b16 %v1177, %v1176
        %v1185 = vpack.c.b16 %v1179, %v1178
        %v1186 = vpack.c.b16 %v1181, %v1180
        %v1187 = vpack.c.b16 %v1182, %v1182
        %v1193 = vunpack.c.l.b16 %v1156
        %v1194 = vunpack.c.l.b16 %v1157
        %v1195 = vunpack.c.l.b16 %v1158
        %v1196 = vunpack.c.l.b16 %v1159
        %v1197 = vunpack.c.l.b16 %v1160
        %v1198 = vpack.c.b16 %v1194, %v1193
        %v1199 = vpack.c.b16 %v1196, %v1195
        %v1200 = vpack.c.b16 %v1197, %v1197
        %vm1203 = vcmask 293888
        %v1205 = vsel %vm1203, %v1183, 0
        %v1208 = vsel %vm1203, %v1184, 0
        %v1211 = vsel %vm1203, %v1185, 0
        %v1214 = vsel %vm1203, %v1186, 0
        %v1217 = vsel %vm1203, %v1187, 0
        %vm1219 = vcmask 1041408
        %v1221 = vsel %vm1219, %v1200, 0
        %1223 = vmatpush.bf16.msra.mxu0 0
        %1224 = vmatpush.bf16.msra.mxu0 0
        %1225 = vmatpush.bf16.msra.mxu0 0
        %1226 = vmatpush.bf16.msra.mxu0 0
        %1227 = vmatpush.bf16.msra.mxu0 0
        %1228 = vmatpush.bf16.msra.mxu0 %v1221
        %1229 = vmatpush.bf16.msra.mxu0 %v1199
        %1230 = vmatpush.bf16.msra.mxu0 %v1198
        %1231 = vmatmul.bf16.gmra.mxu0 %v1205
        %v1232 = vpop.f32.mrf.mxu0
        %v1233 = vadd.f32 %v1163, %v1232
        %v1234 = vpop.f32.mrf.mxu0
        %v1235 = vadd.f32 %v1163, %v1234
        %1236 = vmatmul.bf16.gmra.mxu0 %v1208
        %v1237 = vpop.f32.mrf.mxu0
        %v1238 = vadd.f32 %v1163, %v1237
        %v1239 = vpop.f32.mrf.mxu0
        %v1240 = vadd.f32 %v1163, %v1239
        %1241 = vmatmul.bf16.gmra.mxu0 %v1211
        %v1242 = vpop.f32.mrf.mxu0
        %v1243 = vadd.f32 %v1163, %v1242
        %v1244 = vpop.f32.mrf.mxu0
        %v1245 = vadd.f32 %v1163, %v1244
        %1246 = vmatmul.bf16.gmra.mxu0 %v1214
        %v1247 = vpop.f32.mrf.mxu0
        %v1248 = vadd.f32 %v1163, %v1247
        %v1249 = vpop.f32.mrf.mxu0
        %v1250 = vadd.f32 %v1163, %v1249
        %1251 = vmatmul.bf16.gmra.mxu0 %v1217
        %v1252 = vpop.f32.mrf.mxu0
        %v1253 = vadd.f32 %v1163, %v1252
        %v1254 = vpop.f32.mrf.mxu0
        %1255 = vdwg.mxu0
        %v1256 = vpack.c.bf16 %v1233, %v1233
        %v1257 = vpack.c.bf16 %v1235, %v1235
        %v1258 = vpack.c.bf16 %v1238, %v1238
        %v1259 = vpack.c.bf16 %v1240, %v1240
        %v1260 = vpack.c.bf16 %v1243, %v1243
        %v1261 = vpack.c.bf16 %v1245, %v1245
        %v1262 = vpack.c.bf16 %v1248, %v1248
        %v1263 = vpack.c.bf16 %v1250, %v1250
        %v1264 = vpack.c.bf16 %v1253, %v1253
        %1265 = vst [vmem:[%s187] sm:$0xf] %v1256
        %1266 = vst [vmem:[%s187 + $0x4] sm:$0xf] %v1257
        %1267 = vst [vmem:[%s187 + $0x8] sm:$0xf] %v1258
        %1268 = vst [vmem:[%s187 + $0xc] sm:$0xf] %v1259
        %1269 = vst [vmem:[%s187 + $0x10] sm:$0xf] %v1260
        %1270 = vst [vmem:[%s187 + $0x14] sm:$0xf] %v1261
        %1271 = vst [vmem:[%s187 + $0x18] sm:$0xf] %v1262
        %1272 = vst [vmem:[%s187 + $0x1c] sm:$0xf] %v1263
        %1273 = vst [vmem:[%s187 + $0x20] sm:$0xf] %v1264
        %s1274 = sand.u32 %s109, 1
        %s1275 = scalar_lea.sflag [#allocation4], %s1274
        %s1276 = sand.u32 %s109, 1
        %s1277 = smul.addr %s1276, 36
        %s1278 = scalar_lea.vmem [#allocation3], %s1277
        // Predicated region
        $region33: #{tpu_custom_call.1} parent=31 // pred_check
          %p1279 = pneg %p119
        $region34: #{tpu_custom_call.1} parent=31 // pred_check_branch
          %1281 = sbr.rel (%p1279) target = $region36
        $region35: #{tpu_custom_call.1} parent=31 // pred_region
          %1283 = vsyncadd %s1275, 0
          %s1284 = smul.addr %s22, 9
          %s1285 = smul.addr %s21, 9
          %s1286 = sadd.s32 %s1284, %s1285
          %s1287 = smul.addr %s1286, 4
          %s1288 = scalar_lea.hbm %s3, %s1287
          %s1289 = sshll.u32 %s1278, 4
          %s1290 = int_to_ptr.vmem [resolvable:$true] %s1289
          %s1291 = sshll.u32 %s1288, 4
          %s1292 = int_to_ptr.hbm [resolvable:$true] %s1291
          %1297 = dma.vmem_to_hbm [thread:$0]  %s1290, 576, %s1292, %s1275, 64, 64, 4
        $region36: #{tpu_custom_call.1} parent=31 // pred_fallthru
          _
      $region32: #{tpu_custom_call.1} parent=5 // pred_fallthru
        _
      %p1298 = scmp.le.s32.totalorder 2, %s12
      // Predicated region
      $region37: #{tpu_custom_call.1} parent=5 // pred_check
        %p1299 = pneg %p1298
      $region38: #{tpu_custom_call.1} parent=5 // pred_check_branch
        %1301 = sbr.rel (%p1299) target = $region40
      $region39: #{tpu_custom_call.1} parent=5 // pred_region
        %s1302 = ssub.s32 %s12, 2
        // Predicated region
        $region41: #{tpu_custom_call.1} parent=39 // pred_check
          %p1303 = pneg %p125
        $region42: #{tpu_custom_call.1} parent=39 // pred_check_branch
          %1305 = sbr.rel (%p1303) target = $region44
        $region43: #{tpu_custom_call.1} parent=39 // pred_region
          %s1306 = sand.u32 %s110, 1
          %s1307 = scalar_lea.sflag [#allocation4], %s1306
          %s1308 = sand.u32 %s110, 1
          %s1309 = smul.addr %s1308, 36
          %s1310 = scalar_lea.vmem [#allocation3], %s1309
          %1312 = dma.done %s1307, 576
        $region44: #{tpu_custom_call.1} parent=39 // pred_fallthru
          _
      $region40: #{tpu_custom_call.1} parent=5 // pred_fallthru
        _
    $region6: #{tpu_custom_call.1} parent=1 // loop_footer
      %s16 = sadd.s32 1, %s12
    $region7: #{tpu_custom_call.1} parent=1 // loop_footer_branch
      %11 = sbr.rel target = $region3
    $region8: #{tpu_custom_call.1} parent=1 // loop_exit
      _
    %1313 = vsyncpa [#allocation4], 1
    %s1314 = scalar_lea.sflag [#allocation4], 1
    %1315 = vsyncpa %s1314, 1

</llo_original>
